<compile_context>
chip_gen: v7x
topology: tpu7x:2x2x1
jax: 0.10.0
libtpu: 0.0.40
codegen_flags: <defaults>
</compile_context>

<pallas_src>
import math

import jax
import jax.numpy as jnp
from jax.experimental import pallas as pl
from jax.experimental.pallas import tpu as pltpu


def _make_kernel(OUT):
    def kernel(x_ref, w_ref, o_ref, acc_ref):
        # x_ref : (B, TK)   lane-dense chunk of the flattened (B, N*F) input.
        # w_ref : (OUT, TK) lane-tiled weights, w_rep[o, j] = W[o, j % F] (resident).
        # o_ref : (B, OUT)  partial output for this parallel slice (bias added
        #                   once in the wrapper epilogue).
        # acc_ref: (B, OUT) f32 accumulator, persists across the reduction axis.
        k = pl.program_id(1)

        @pl.when(k == 0)
        def _init():
            acc_ref[...] = jnp.zeros_like(acc_ref)

        xb = x_ref[...]  # (B, TK) f32
        # Tiny OUT (=2): unrolled lane-dense multiply + cross-lane reduce (VPU + XLU).
        parts = [
            jnp.sum(xb * w_ref[o:o + 1, :], axis=-1, keepdims=True)  # (B, 1)
            for o in range(OUT)
        ]
        acc_ref[...] += jnp.concatenate(parts, axis=1)  # (B, OUT)

        @pl.when(k == pl.num_programs(1) - 1)
        def _finalize():
            o_ref[...] = acc_ref[...]

    return kernel


def _x_block_spec(B, tk, chunks_per_slice, num_buffers):
    idx = lambda p, k: (0, p * chunks_per_slice + k)
    if num_buffers <= 2:
        return pl.BlockSpec((B, tk), idx)  # default double-buffering
    try:
        return pl.BlockSpec((B, tk), idx, pipeline_mode=pl.Buffered(num_buffers))
    except (TypeError, AttributeError):
        # Older Pallas without pipeline_mode / Buffered: fall back to default.
        return pl.BlockSpec((B, tk), idx)


def sum_then_linear(x, w, b, *, vmem_budget_bytes=8 << 20, max_buffers=3):
    """Computes (x.sum(axis=1)) @ w.T + b with w:(OUT, F), b:(OUT,) (nn.Linear semantics)."""
    B, N, F = x.shape
    OUT = w.shape[0]
    total = N * F

    # Lane-dense chunking: chunk length must be a multiple of F (keeps the tiled
    # weight phase-aligned) and of 128 (lane width / (8,128) BlockSpec rule).
    lane_chunk = (F * 128) // math.gcd(F, 128)          # lcm(F, 128) = 384 for F=3
    total_up = pl.cdiv(total, lane_chunk) * lane_chunk

    # Largest chunk that keeps `max_buffers` x-buffers inside the VMEM budget
    # (conservative for v7x: 64 MiB physical / 32 MiB scoped-default VMEM).
    max_tk = (vmem_budget_bytes // (B * 4 * max_buffers)) // lane_chunk * lane_chunk
    max_tk = max(lane_chunk, max_tk)
    tk = min(max_tk, total_up)

    num_chunks = pl.cdiv(total, tk)
    # Split the reduction across 2 parallel slices so both v7x TensorCores are
    # used; harmless on single-core v5e/v6e ("parallel" there is near-free).
    P = 2 if num_chunks >= 2 else 1
    chunks_per_slice = pl.cdiv(num_chunks, P)
    padded_total = P * chunks_per_slice * tk

    x_flat = x.reshape(B, total).astype(jnp.float32)
    if padded_total != total:
        # Zero padding is exactly neutral for the weighted sum.
        x_flat = jnp.pad(x_flat, ((0, 0), (0, padded_total - total)))

    w_rep = jnp.tile(w.astype(jnp.float32), (1, tk // F))  # (OUT, tk)

    num_buffers = max_buffers if chunks_per_slice >= max_buffers else 2

    partials = pl.pallas_call(
        _make_kernel(OUT),
        out_shape=jax.ShapeDtypeStruct((P, B, OUT), jnp.float32),
        grid=(P, chunks_per_slice),
        in_specs=[
            _x_block_spec(B, tk, chunks_per_slice, num_buffers),
            pl.BlockSpec((OUT, tk), lambda p, k: (0, 0)),   # resident weight tile
        ],
        out_specs=pl.BlockSpec((None, B, OUT), lambda p, k: (p, 0, 0)),
        scratch_shapes=[pltpu.VMEM((B, OUT), jnp.float32)],
        compiler_params=pltpu.CompilerParams(
            dimension_semantics=("parallel", "arbitrary")),
        cost_estimate=pl.CostEstimate(
            flops=2 * B * padded_total * OUT,
            transcendentals=0,
            bytes_accessed=B * padded_total * 4 + OUT * tk * 4 + P * B * OUT * 4,
        ),
    )(x_flat, w_rep)

    # Tiny epilogue: combine per-core partials and add the bias once.
    return jnp.sum(partials, axis=0) + b.astype(jnp.float32)[None, :]


if __name__ == "__main__":
    key = jax.random.PRNGKey(0)
    kx, kw, kb = jax.random.split(key, 3)

    # x.sum(dim=1) must yield (..., 3) for Linear(3, 2), so x is (B, N, 3).
    B, N, F, OUT = 2, 8, 3, 2
    x = jax.random.normal(kx, (B, N, F), dtype=jnp.float32)

    # Deterministic synthetic "Linear(3, 2)" parameters (not a checkpoint).
    w = jax.random.normal(kw, (OUT, F), dtype=jnp.float32) * 0.5
    b = jax.random.normal(kb, (OUT,), dtype=jnp.float32) * 0.1

    out = sum_then_linear(x, w, b)
    jax.block_until_ready(out)

    # Reference of the PyTorch semantics.
    ref = jnp.sum(x, axis=1) @ w.T + b
    assert out.shape == (B, OUT)
    assert jnp.allclose(out, ref, atol=1e-5, rtol=1e-5), (out, ref)

    print("KERNEL_OK")
</pallas_src>

<mosaic_0001>
module attributes {stable_mosaic.version = 11 : i64} {
  func.func @kernel(%arg0: i32, %arg1: i32, %arg2: memref<2x384xf32, #tpu.memory_space<vmem>>, %arg3: memref<2x384xf32, #tpu.memory_space<vmem>>, %arg4: memref<1x2x2xf32, #tpu.memory_space<vmem>>, %arg5: memref<2x2xf32, #tpu.memory_space<vmem>>) attributes {dimension_semantics = [#tpu.dimension_semantics<parallel>, #tpu.dimension_semantics<arbitrary>], iteration_bounds = array<i64: 1, 1>, scalar_prefetch = 0 : i64, scratch_operands = 1 : i64, tpu.core_type = #tpu.core_type<tc>, window_params = [{transform_indices = @transform_0, window_bounds = array<i64: 2, 384>}, {pipeline_mode = #tpu.pipeline_mode<synchronous>, transform_indices = @transform_1, window_bounds = array<i64: 2, 384>}, {transform_indices = @transform_2, window_bounds = array<i64: 1, 2, 2>}]} {
    %c0_i32 = arith.constant 0 : i32
    %0 = arith.cmpi eq, %arg1, %c0_i32 : i32
    %1 = arith.extui %0 : i1 to i32
    %c0_i32_0 = arith.constant 0 : i32
    %2 = arith.cmpi ne, %1, %c0_i32_0 : i32
    scf.if %2 {
      %cst_12 = arith.constant 0.000000e+00 : f32
      %21 = vector.broadcast %cst_12 : f32 to vector<2x2xf32>
      %c0_13 = arith.constant 0 : index
      %c0_14 = arith.constant 0 : index
      %22 = vector.load %arg5[%c0_13, %c0_14] : memref<2x2xf32, #tpu.memory_space<vmem>>, vector<2x2xf32>
      tpu.vector_store %arg5[%c0_13, %c0_14], %21 {strides = array<i32>} : memref<2x2xf32, #tpu.memory_space<vmem>>, vector<2x2xf32>,
    } else {
    }
    %c0 = arith.constant 0 : index
    %c0_1 = arith.constant 0 : index
    %3 = vector.load %arg2[%c0, %c0_1] : memref<2x384xf32, #tpu.memory_space<vmem>>, vector<2x384xf32>
    %c0_2 = arith.constant 0 : index
    %c0_3 = arith.constant 0 : index
    %4 = vector.load %arg3[%c0_2, %c0_3] : memref<2x384xf32, #tpu.memory_space<vmem>>, vector<1x384xf32>
    %5 = vector.broadcast %4 : vector<1x384xf32> to vector<2x384xf32>
    %6 = arith.mulf %3, %5 : vector<2x384xf32>
    %cst = arith.constant dense<0.000000e+00> : vector<2xf32>
    %7 = vector.multi_reduction <add>, %6, %cst [1] : vector<2x384xf32> to vector<2xf32>
    %8 = vector.shape_cast %7 : vector<2xf32> to vector<2x1xf32>
    %c1 = arith.constant 1 : index
    %c0_4 = arith.constant 0 : index
    %9 = vector.load %arg3[%c1, %c0_4] : memref<2x384xf32, #tpu.memory_space<vmem>>, vector<1x384xf32>
    %10 = vector.broadcast %9 : vector<1x384xf32> to vector<2x384xf32>
    %11 = arith.mulf %3, %10 : vector<2x384xf32>
    %cst_5 = arith.constant dense<0.000000e+00> : vector<2xf32>
    %12 = vector.multi_reduction <add>, %11, %cst_5 [1] : vector<2x384xf32> to vector<2xf32>
    %13 = vector.shape_cast %12 : vector<2xf32> to vector<2x1xf32>
    %c0_6 = arith.constant 0 : index
    %c0_7 = arith.constant 0 : index
    %14 = vector.load %arg5[%c0_6, %c0_7] : memref<2x2xf32, #tpu.memory_space<vmem>>, vector<2x2xf32>
    %15 = tpu.concatenate %8, %13 in 1 : vector<2x1xf32>, vector<2x1xf32> -> vector<2x2xf32>
    %16 = arith.addf %14, %15 : vector<2x2xf32>
    %c0_8 = arith.constant 0 : index
    %c0_9 = arith.constant 0 : index
    %17 = vector.load %arg5[%c0_8, %c0_9] : memref<2x2xf32, #tpu.memory_space<vmem>>, vector<2x2xf32>
    tpu.vector_store %arg5[%c0_8, %c0_9], %16 {strides = array<i32>} : memref<2x2xf32, #tpu.memory_space<vmem>>, vector<2x2xf32>,
    %c0_i32_10 = arith.constant 0 : i32
    %18 = arith.cmpi eq, %arg1, %c0_i32_10 : i32
    %19 = arith.extui %18 : i1 to i32
    %c0_i32_11 = arith.constant 0 : i32
    %20 = arith.cmpi ne, %19, %c0_i32_11 : i32
    scf.if %20 {
      %c0_12 = arith.constant 0 : index
      %c0_13 = arith.constant 0 : index
      %21 = vector.load %arg5[%c0_12, %c0_13] : memref<2x2xf32, #tpu.memory_space<vmem>>, vector<2x2xf32>
      %c0_14 = arith.constant 0 : index
      %c0_15 = arith.constant 0 : index
      %c0_16 = arith.constant 0 : index
      %22 = vector.load %arg4[%c0_14, %c0_15, %c0_16] : memref<1x2x2xf32, #tpu.memory_space<vmem>>, vector<1x2x2xf32>
      %23 = vector.shape_cast %22 : vector<1x2x2xf32> to vector<2x2xf32>
      %24 = vector.shape_cast %21 : vector<2x2xf32> to vector<1x2x2xf32>
      tpu.vector_store %arg4[%c0_14, %c0_15, %c0_16], %24 {strides = array<i32>} : memref<1x2x2xf32, #tpu.memory_space<vmem>>, vector<1x2x2xf32>,
    } else {
    }
    return
  }
  func.func @transform_0(%arg0: i32, %arg1: i32) -> (i32, i32) {
    %c1_i32 = arith.constant 1 : i32
    %0 = arith.muli %arg0, %c1_i32 : i32
    %1 = arith.addi %0, %arg1 : i32
    %c0_i32 = arith.constant 0 : i32
    %c0_i32_0 = arith.constant 0 : i32
    return %c0_i32, %1 : i32, i32
  }
  func.func @transform_1(%arg0: i32, %arg1: i32) -> (i32, i32) {
    %c0_i32 = arith.constant 0 : i32
    %c0_i32_0 = arith.constant 0 : i32
    %c0_i32_1 = arith.constant 0 : i32
    return %c0_i32, %c0_i32_0 : i32, i32
  }
  func.func @transform_2(%arg0: i32, %arg1: i32) -> (i32, i32, i32) {
    %c0_i32 = arith.constant 0 : i32
    %c0_i32_0 = arith.constant 0 : i32
    %c0_i32_1 = arith.constant 0 : i32
    return %arg0, %c0_i32, %c0_i32_0 : i32, i32, i32
  }
}

</mosaic_0001>

<llo_original>
// kernel: tpu_custom_call.1
$region0: #{tpu_custom_call.1}
  #allocation0 [shape = 'u32[]', space=smem, size = 0x4, offset = 0x4, fixed_abs, tag = 'smem constant byte address 0x4 - core index']
  #allocation1 [shape = 'u32[144,128]{1,0:T(1,128)}', space=vmem, size = 0x12000, scoped, tag = 'internal scratch']
  #allocation2 [shape = 'f32[2,2]{1,0:T(2,128)}', space=vmem, size = 0x400, scoped, tag = 'scratch operand']
  %s0 = inlined_call_operand.hbm [shape: f32[2,384], index: 0, kind: input, shape index: {}]
  %s1 = inlined_call_operand.hbm [shape: f32[2,384], index: 1, kind: input, shape index: {}]
  %s2 = inlined_call_operand.hbm [shape: f32[1,2,2], index: 2, kind: output, shape index: {}]
  %s3 = sld [smem:[#allocation0]]
  $region34: #{tpu_custom_call.1} parent=0
    _
  %s5 = ssub.s32 1, %s3
  %s6 = scalar_select 0, %s5, %s3
  $region1: #{tpu_custom_call.1} parent=0
    #allocation3 [shape = 'u8[3072]{0}', space=vmem, size = 0xc00, scoped, tag = 'input window, operand 0, single buffered']
    #allocation4 [shape = 's32[1]{0}', space=sflag, size = 0x4, scoped, tag = 'scoped memory for tpu_custom_call.1']
    #allocation5 [shape = 's32[1]{0}', space=sflag, size = 0x4, scoped, tag = 'scoped memory for tpu_custom_call.1']
    #allocation6 [shape = 'u8[3072]{0}', space=vmem, size = 0xc00, scoped, tag = 'input window, operand 1, single buffered']
    #allocation7 [shape = 's32[1]{0}', space=sflag, size = 0x4, scoped, tag = 'scoped memory for tpu_custom_call.1']
    #allocation8 [shape = 'u8[1024]{0}', space=vmem, size = 0x400, scoped, tag = 'output window, operand 0, single buffered']
    %7 = vsyncpa [#allocation4], 0
    %8 = vsyncpa [#allocation7], 0
    %9 = vsyncpa [#allocation5], 0
    // Predicated region
    $region2: #{tpu_custom_call.1} parent=1 // pred_check
      _
    $region3: #{tpu_custom_call.1} parent=1 // pred_check_branch
      %11 = sbr.rel (0) target = $region5
    $region4: #{tpu_custom_call.1} parent=1 // pred_region
      %s12 = sadd.s32 0, 0
      %s13 = smul.u32 3, %s12
      %s15 = ssub.s32 96, 96
      %16 = vsyncadd [#allocation4], %s15
      %s17 = smul.addr %s13, 32
      %s18 = scalar_lea.hbm %s0, %s17
      %s20 = sshll.u32 [#allocation3], 4
      %s21 = int_to_ptr.vmem [resolvable:$true] %s20
      %23 = dma.hbm_to_vmem [thread:$0]  %s18, 96, %s21, [#allocation4]
    $region5: #{tpu_custom_call.1} parent=1 // pred_fallthru
      _
    // Predicated region
    $region6: #{tpu_custom_call.1} parent=1 // pred_check
      _
    $region7: #{tpu_custom_call.1} parent=1 // pred_check_branch
      %25 = sbr.rel (0) target = $region9
    $region8: #{tpu_custom_call.1} parent=1 // pred_region
      %s27 = ssub.s32 96, 96
      %28 = vsyncadd [#allocation7], %s27
      %s30 = sshll.u32 [#allocation6], 4
      %s31 = int_to_ptr.vmem [resolvable:$true] %s30
      %33 = dma.hbm_to_vmem [thread:$0]  %s1, 96, %s31, [#allocation7]
    $region9: #{tpu_custom_call.1} parent=1 // pred_fallthru
      _
    // Predicated region
    $region10: #{tpu_custom_call.1} parent=1 // pred_check
      _
    $region11: #{tpu_custom_call.1} parent=1 // pred_check_branch
      %35 = sbr.rel (0) target = $region13
    $region12: #{tpu_custom_call.1} parent=1 // pred_region
      %36 = dma.done [#allocation4], 96
    $region13: #{tpu_custom_call.1} parent=1 // pred_fallthru
      _
    // Predicated region
    $region14: #{tpu_custom_call.1} parent=1 // pred_check
      _
    $region15: #{tpu_custom_call.1} parent=1 // pred_check_branch
      %38 = sbr.rel (0) target = $region17
    $region16: #{tpu_custom_call.1} parent=1 // pred_region
      %39 = dma.done [#allocation7], 96
    $region17: #{tpu_custom_call.1} parent=1 // pred_fallthru
      _
    %s40 = sadd.s32 0, 0
    %s41 = smul.u32 3, %s40
    %p42 = scmp.eq.s32.totalorder 0, 0
    // Predicated region
    $region18: #{tpu_custom_call.1} parent=1 // pred_check
      %p43 = pneg %p42
    $region19: #{tpu_custom_call.1} parent=1 // pred_check_branch
      %45 = sbr.rel (%p43) target = $region21
    $region20: #{tpu_custom_call.1} parent=1 // pred_region
      %vm46 = vcmask 9216
      %47 = vst.msk [vmem:[#allocation2] sm:$0x3] %vm46, 0.0
    $region21: #{tpu_custom_call.1} parent=1 // pred_fallthru
      _
    %v48 = vld [vmem:[#allocation3] sm:$0x3f]
    %v49 = vld [vmem:[#allocation6] ss:$2 sm:$0x7]
    %v51 = vlaneseq
    %v52 = vshrl.u32 %v51, 7
    %v53 = vsub.s32 0, %v52
    %v54 = vrot.slane %v49, %v53
    %v55 = vlaneseq
    %v56 = vshrl.u32 %v55, 7
    %v57 = vsub.s32 1, %v56
    %v58 = vrot.slane %v49, %v57
    %v59 = vlaneseq
    %v60 = vshrl.u32 %v59, 7
    %v61 = vsub.s32 2, %v60
    %v62 = vrot.slane %v49, %v61
    %v63 = vcombine.low %v54, %v58
    %v65 = vunpack.c.l.s4 1983009808
    %v66 = vunpack.c.0.s8 %v65
    %v67 = vlaneseq
    %v68 = vshrl.u32 %v67, 7
    %v69 = vsub.s32 %v66, %v68
    %v70 = vrot.slane %v63, %v69
    %v72 = vunpack.c.l.s4 1983009808
    %v73 = vunpack.c.0.s8 %v72
    %v74 = vlaneseq
    %v75 = vshrl.u32 %v74, 7
    %v76 = vsub.s32 %v73, %v75
    %v77 = vrot.slane %v62, %v76
    %v78 = vcombine.low %v70, %v77
    %v80 = vmul.f32 %v48, %v78
    %v82 = vcombine.high %v80, %v80
    %v84 = vunpack.c.l.s4 1983009808
    %v85 = vunpack.c.0.s8 %v84
    %v86 = vlaneseq
    %v87 = vshrl.u32 %v86, 7
    %v88 = vsub.s32 %v85, %v87
    %v89 = vrot.slane %v80, %v88
    %v91 = vunpack.c.l.s4 1983009808
    %v92 = vunpack.c.0.s8 %v91
    %v93 = vlaneseq
    %v94 = vshrl.u32 %v93, 7
    %v95 = vsub.s32 %v92, %v94
    %v96 = vrot.slane %v82, %v95
    %v97 = vcombine.high %v89, %v89
    %vm101 = vcmask 1041408
    %v102 = vsel %vm101, %v89, 0.0
    %v103 = vsel %vm101, %v97, 0.0
    %v104 = vadd.f32 %v102, %v103
    %v105 = vsel %vm101, %v96, 0.0
    %v106 = vadd.f32 %v104, %v105
    %107 = vadd.xlane.f32.xlu0 %v106
    %v108 = vpop.xlane.xlu0 %107
    %s109 = scalar_lea.vmem [#allocation6], 1
    %v110 = vld [vmem:[%s109] ss:$2 sm:$0x7]
    %v112 = vlaneseq
    %v113 = vshrl.u32 %v112, 7
    %v114 = vsub.s32 0, %v113
    %v115 = vrot.slane %v110, %v114
    %v116 = vlaneseq
    %v117 = vshrl.u32 %v116, 7
    %v118 = vsub.s32 1, %v117
    %v119 = vrot.slane %v110, %v118
    %v120 = vlaneseq
    %v121 = vshrl.u32 %v120, 7
    %v122 = vsub.s32 2, %v121
    %v123 = vrot.slane %v110, %v122
    %v124 = vcombine.low %v115, %v119
    %v126 = vunpack.c.l.s4 1983009808
    %v127 = vunpack.c.0.s8 %v126
    %v128 = vlaneseq
    %v129 = vshrl.u32 %v128, 7
    %v130 = vsub.s32 %v127, %v129
    %v131 = vrot.slane %v124, %v130
    %v133 = vunpack.c.l.s4 1983009808
    %v134 = vunpack.c.0.s8 %v133
    %v135 = vlaneseq
    %v136 = vshrl.u32 %v135, 7
    %v137 = vsub.s32 %v134, %v136
    %v138 = vrot.slane %v123, %v137
    %v139 = vcombine.low %v131, %v138
    %v141 = vmul.f32 %v48, %v139
    %v143 = vcombine.high %v141, %v141
    %v145 = vunpack.c.l.s4 1983009808
    %v146 = vunpack.c.0.s8 %v145
    %v147 = vlaneseq
    %v148 = vshrl.u32 %v147, 7
    %v149 = vsub.s32 %v146, %v148
    %v150 = vrot.slane %v141, %v149
    %v152 = vunpack.c.l.s4 1983009808
    %v153 = vunpack.c.0.s8 %v152
    %v154 = vlaneseq
    %v155 = vshrl.u32 %v154, 7
    %v156 = vsub.s32 %v153, %v155
    %v157 = vrot.slane %v143, %v156
    %v158 = vcombine.high %v150, %v150
    %v162 = vsel %vm101, %v150, 0.0
    %v163 = vsel %vm101, %v158, 0.0
    %v164 = vadd.f32 %v162, %v163
    %v165 = vsel %vm101, %v157, 0.0
    %v166 = vadd.f32 %v164, %v165
    %167 = vadd.xlane.f32.xlu0 %v166
    %v168 = vpop.xlane.xlu0 %167
    %v169 = vld [vmem:[#allocation2] sm:$0x3]
    %vm170 = vcmask 7168
    %v171 = vsel %vm170, %v108, %v168
    %v172 = vadd.f32 %v169, %v171
    %vm173 = vcmask 9216
    %174 = vst.msk [vmem:[#allocation2] sm:$0x3] %vm173, %v172
    // Predicated region
    $region22: #{tpu_custom_call.1} parent=1 // pred_check
      %p175 = pneg %p42
    $region23: #{tpu_custom_call.1} parent=1 // pred_check_branch
      %177 = sbr.rel (%p175) target = $region25
    $region24: #{tpu_custom_call.1} parent=1 // pred_region
      %v178 = vld [vmem:[#allocation2] sm:$0x3]
      %179 = vst.msk [vmem:[#allocation8] sm:$0x3] %vm173, %v178
    $region25: #{tpu_custom_call.1} parent=1 // pred_fallthru
      _
    // Predicated region
    $region26: #{tpu_custom_call.1} parent=1 // pred_check
      _
    $region27: #{tpu_custom_call.1} parent=1 // pred_check_branch
      %181 = sbr.rel (0) target = $region29
    $region28: #{tpu_custom_call.1} parent=1 // pred_region
      %s183 = ssub.s32 32, 32
      %184 = vsyncadd [#allocation5], %s183
      %s186 = sshll.u32 [#allocation8], 4
      %s187 = int_to_ptr.vmem [resolvable:$true] %s186
      %189 = dma.vmem_to_hbm [thread:$0]  %s187, 32, %s2, [#allocation5]
    $region29: #{tpu_custom_call.1} parent=1 // pred_fallthru
      _
    // Predicated region
    $region30: #{tpu_custom_call.1} parent=1 // pred_check
      _
    $region31: #{tpu_custom_call.1} parent=1 // pred_check_branch
      %191 = sbr.rel (0) target = $region33
    $region32: #{tpu_custom_call.1} parent=1 // pred_region
      %192 = dma.done [#allocation5], 32
    $region33: #{tpu_custom_call.1} parent=1 // pred_fallthru
      _
    %193 = vsyncpa [#allocation4], 1
    %194 = vsyncpa [#allocation7], 1
    %195 = vsyncpa [#allocation5], 1

</llo_original>
